<compile_context>
chip_gen: v7x
topology: tpu7x:2x2x1
jax: 0.10.0
libtpu: 0.0.40
codegen_flags: <defaults>
</compile_context>

<pallas_src>
import functools

import numpy as np
import jax
import jax.numpy as jnp
from jax.experimental import pallas as pl
from jax.experimental.pallas import tpu as pltpu


_CHUNK_N = 1024                 # max nodes per in-kernel onehot/matmul chunk
_TARGET_TILE_BYTES = 1 << 20    # ~1 MiB streamed z tile (good on v5e/v6e/v7x)


def _round_up(x, m):
    return ((x + m - 1) // m) * m


def _vmem_capacity_bytes():
    try:
        return int(pltpu.get_tpu_info().vmem_capacity_bytes)
    except Exception:
        return 64 * 1024 * 1024  # conservative fallback (v7x has the smallest VMEM)


def _pooling_kernel(batch_ref, z_ref, part_ref, *, chunk):
    """Accumulate onehot(batch) @ [z | 1] into the resident partial block.

    Per grid step:
      batch_ref: (1, TILE_N) int32    z_ref: (TILE_N, H+1) f32
      part_ref:  (1, G, H+1) f32 output block, resident across the tile axis.
    """
    t = pl.program_id(1)
    g = part_ref.shape[1]
    hp1 = z_ref.shape[1]
    tile_n = z_ref.shape[0]
    n_chunks = tile_n // chunk

    @pl.when(t == 0)
    def _init():
        part_ref[...] = jnp.zeros_like(part_ref)

    def chunk_body(c, acc):
        off = pl.multiple_of(c * chunk, chunk)
        ids = batch_ref[:, pl.ds(off, chunk)]                    # (1, chunk)
        zc = z_ref[pl.ds(off, chunk), :]                         # (chunk, H+1)
        giota = jax.lax.broadcasted_iota(jnp.int32, (g, chunk), 0)
        onehot = (giota == ids).astype(jnp.float32)              # (G, chunk)
        return acc + jnp.dot(onehot, zc, preferred_element_type=jnp.float32)

    acc = jax.lax.fori_loop(0, n_chunks, chunk_body,
                            jnp.zeros((g, hp1), jnp.float32), unroll=True)
    part_ref[...] += acc[None]


def _finalize_kernel(part_ref, w1_ref, b1_ref, w2_ref, b2_ref, out_ref):
    """Combine shard partials, segment-mean divide, fc1 -> ReLU -> fc2."""
    total = jnp.sum(part_ref[...], axis=0)                       # (G, H+1) f32
    g, hp1 = total.shape
    # Extract the fused count column (last column) via a masked lane reduce.
    col = jax.lax.broadcasted_iota(jnp.int32, (g, hp1), 1)
    cnt = jnp.sum(jnp.where(col == hp1 - 1, total, 0.0),
                  axis=1, keepdims=True)                         # (G, 1)
    pooled = total / jnp.maximum(cnt, 1.0)                       # exact f32 divide
    # w1 is zero-padded on its last row -> the count column contributes 0.
    x = jnp.dot(pooled, w1_ref[...],
                preferred_element_type=jnp.float32) + b1_ref[...]
    x = jnp.maximum(x, 0.0)
    out = jnp.dot(x, w2_ref[...],
                  preferred_element_type=jnp.float32) + b2_ref[...]
    out_ref[...] = out.astype(out_ref.dtype)


def graph_score_model(z, batch, w1, b1, w2, b2, num_graphs,
                      num_shards=2, target_tile_bytes=_TARGET_TILE_BYTES):
    n, h = z.shape
    h4 = w1.shape[1]
    c = w2.shape[1]
    hp1 = h + 1
    row_bytes = 4 * hp1

    # ---- byte-budgeted, generation-aware tile selection ---------------------
    vmem_cap = _vmem_capacity_bytes()
    max_tile_bytes = max(vmem_cap // 8, 128 * row_bytes)   # room for 2x buffering
    tile_bytes = min(target_tile_bytes, max_tile_bytes)
    per_shard = pl.cdiv(n, num_shards)
    tile_n = max(min(tile_bytes // row_bytes, per_shard), 128)
    tile_n = _round_up(tile_n, 128)
    chunk = min(_CHUNK_N, tile_n)          # multiple of 128, bounds vreg pressure
    tile_n = _round_up(tile_n, chunk)      # so tile_n % chunk == 0
    tiles_per_shard = pl.cdiv(per_shard, tile_n)
    n_pad = num_shards * tiles_per_shard * tile_n

    # ---- data prep: fuse counter column, pad nodes --------------------------
    z = z.astype(jnp.float32)
    batch = batch.astype(jnp.int32)
    z_aug = jnp.concatenate([z, jnp.ones((n, 1), jnp.float32)], axis=1)
    if n_pad != n:
        # Padded nodes: zero features, graph id -1 (matches no graph).
        z_aug = jnp.pad(z_aug, ((0, n_pad - n), (0, 0)))
        batch = jnp.pad(batch, (0, n_pad - n), constant_values=-1)
    batch_2d = batch.reshape(1, n_pad)

    # ---- phase 1: streaming segment-sum + counts ----------------------------
    work_bytes = (2 * tile_n * row_bytes         # z tiles (double-buffered)
                  + 2 * tile_n * 4               # batch-id tiles
                  + 2 * num_graphs * hp1 * 4     # resident partial block
                  + 2 * num_graphs * chunk * 4   # onehot scratch slack
                  + chunk * row_bytes)           # chunk slice slack
    vmem_limit = int(min(vmem_cap, max(2 * work_bytes + (8 << 20), 16 << 20)))

    cost = pl.CostEstimate(
        flops=2 * n_pad * num_graphs * hp1,
        transcendentals=0,
        bytes_accessed=n_pad * row_bytes + n_pad * 4
        + num_shards * num_graphs * hp1 * 4,
    )

    grid_spec = pltpu.PrefetchScalarGridSpec(
        num_scalar_prefetch=0,
        grid=(num_shards, tiles_per_shard),
        in_specs=[
            pl.BlockSpec((1, tile_n),
                         lambda s, t: (0, s * tiles_per_shard + t)),   # batch ids
            pl.BlockSpec((tile_n, hp1),
                         lambda s, t: (s * tiles_per_shard + t, 0)),   # [z | 1]
        ],
        out_specs=pl.BlockSpec((1, num_graphs, hp1), lambda s, t: (s, 0, 0)),
    )
    partials = pl.pallas_call(
        functools.partial(_pooling_kernel, chunk=chunk),
        out_shape=jax.ShapeDtypeStruct((num_shards, num_graphs, hp1), jnp.float32),
        grid_spec=grid_spec,
        compiler_params=pltpu.CompilerParams(
            dimension_semantics=("parallel", "arbitrary"),
            vmem_limit_bytes=vmem_limit,
        ),
        cost_estimate=cost,
    )(batch_2d, z_aug)

    # ---- phase 2: tiny finalize (combine shards, divide, fc1/ReLU/fc2) ------
    w1_pad = jnp.concatenate(
        [w1.astype(jnp.float32), jnp.zeros((1, h4), jnp.float32)], axis=0)
    b1_2d = b1.reshape(1, h4).astype(jnp.float32)
    b2_2d = b2.reshape(1, c).astype(jnp.float32)

    return pl.pallas_call(
        _finalize_kernel,
        out_shape=jax.ShapeDtypeStruct((num_graphs, c), jnp.float32),
    )(partials, w1_pad, b1_2d, w2.astype(jnp.float32), b2_2d)


def _reference(z, batch, w1, b1, w2, b2, num_graphs):
    seg_sum = jax.ops.segment_sum(z, batch, num_segments=num_graphs)
    counts = jax.ops.segment_sum(jnp.ones((z.shape[0],), z.dtype), batch,
                                 num_segments=num_graphs)
    pooled = seg_sum / jnp.maximum(counts, 1.0)[:, None]
    h = jnp.maximum(pooled @ w1 + b1, 0.0)
    return h @ w2 + b2


if __name__ == "__main__":
    key = jax.random.PRNGKey(0)
    N = 1000          # total nodes (not a tile multiple -> exercises padding)
    HIDDEN = 32       # hidden_dim
    H4 = HIDDEN // 4
    NUM_CLASSES = 21
    NUM_GRAPHS = 4

    k_z, k_w1, k_b1, k_w2, k_b2 = jax.random.split(key, 5)
    z = jax.random.normal(k_z, (N, HIDDEN), dtype=jnp.float32)
    # Node -> graph assignment (sorted, every graph non-empty: 250 nodes each).
    batch = jnp.repeat(jnp.arange(NUM_GRAPHS, dtype=jnp.int32), N // NUM_GRAPHS)

    # Deterministic parameter init (PyTorch Linear-style uniform bounds).
    bound1 = 1.0 / np.sqrt(HIDDEN)
    bound2 = 1.0 / np.sqrt(H4)
    w1 = jax.random.uniform(k_w1, (HIDDEN, H4), jnp.float32, -bound1, bound1)
    b1 = jax.random.uniform(k_b1, (H4,), jnp.float32, -bound1, bound1)
    w2 = jax.random.uniform(k_w2, (H4, NUM_CLASSES), jnp.float32, -bound2, bound2)
    b2 = jax.random.uniform(k_b2, (NUM_CLASSES,), jnp.float32, -bound2, bound2)

    out = graph_score_model(z, batch, w1, b1, w2, b2, NUM_GRAPHS)
    out = jax.block_until_ready(out)

    ref = _reference(z, batch, w1, b1, w2, b2, NUM_GRAPHS)
    np.testing.assert_allclose(np.asarray(out), np.asarray(ref),
                               rtol=1e-5, atol=1e-5)
    print("KERNEL_OK")
</pallas_src>

<mosaic_0001>
module attributes {stable_mosaic.version = 11 : i64} {
  func.func @_pooling_kernel(%arg0: i32, %arg1: i32, %arg2: memref<1x512xi32, #tpu.memory_space<vmem>>, %arg3: memref<512x33xf32, #tpu.memory_space<vmem>>, %arg4: memref<1x4x33xf32, #tpu.memory_space<vmem>>) attributes {dimension_semantics = [#tpu.dimension_semantics<parallel>, #tpu.dimension_semantics<arbitrary>], iteration_bounds = array<i64: 2, 1>, scalar_prefetch = 0 : i64, scratch_operands = 0 : i64, tpu.core_type = #tpu.core_type<tc>, window_params = [{transform_indices = @transform_0, window_bounds = array<i64: 1, 512>}, {transform_indices = @transform_1, window_bounds = array<i64: 512, 33>}, {transform_indices = @transform_2, window_bounds = array<i64: 1, 4, 33>}]} {
    %c0_i32 = arith.constant 0 : i32
    %0 = arith.cmpi eq, %arg1, %c0_i32 : i32
    %1 = arith.extui %0 : i1 to i32
    %c0_i32_0 = arith.constant 0 : i32
    %2 = arith.cmpi ne, %1, %c0_i32_0 : i32
    scf.if %2 {
      %cst_10 = arith.constant 0.000000e+00 : f32
      %21 = vector.broadcast %cst_10 : f32 to vector<1x4x33xf32>
      %c0_11 = arith.constant 0 : index
      %c0_12 = arith.constant 0 : index
      %c0_13 = arith.constant 0 : index
      %22 = vector.load %arg4[%c0_11, %c0_12, %c0_13] : memref<1x4x33xf32, #tpu.memory_space<vmem>>, vector<1x4x33xf32>
      tpu.vector_store %arg4[%c0_11, %c0_12, %c0_13], %21 {strides = array<i32>} : memref<1x4x33xf32, #tpu.memory_space<vmem>>, vector<1x4x33xf32>,
    } else {
    }
    %cst = arith.constant 0.000000e+00 : f32
    %3 = vector.broadcast %cst : f32 to vector<4x33xf32>
    %c0_i32_1 = arith.constant 0 : i32
    %c512_i32 = arith.constant 512 : i32
    %4 = arith.muli %c0_i32_1, %c512_i32 : i32
    %5 = tpu.assume_multiple %4, 512 : i32
    %c0 = arith.constant 0 : index
    %6 = arith.index_cast %5 : i32 to index
    %7 = vector.load %arg2[%c0, %6] : memref<1x512xi32, #tpu.memory_space<vmem>>, vector<1x512xi32>
    %8 = arith.index_cast %5 : i32 to index
    %c0_2 = arith.constant 0 : index
    %9 = vector.load %arg3[%8, %c0_2] : memref<512x33xf32, #tpu.memory_space<vmem>>, vector<512x33xf32>
    %10 = tpu.iota {dimensions = array<i32: 0>} : vector<4x512xi32>
    %11 = vector.broadcast %7 : vector<1x512xi32> to vector<4x512xi32>
    %12 = arith.cmpi eq, %10, %11 : vector<4x512xi32>
    %13 = arith.extui %12 : vector<4x512xi1> to vector<4x512xi32>
    %14 = arith.sitofp %13 : vector<4x512xi32> to vector<4x512xf32>
    %cst_3 = arith.constant dense<0.000000e+00> : vector<4x33xf32>
    %15 = tpu.matmul %14, %9, %cst_3 {dimension_numbers = #tpu.dot_dimension_numbers<[1], [0], [0], [1], [0, 0, 1, 1], [], []>} : vector<4x512xf32>, vector<512x33xf32>, vector<4x33xf32> -> vector<4x33xf32>
    %16 = arith.addf %3, %15 : vector<4x33xf32>
    %c1_i32 = arith.constant 1 : i32
    %c0_4 = arith.constant 0 : index
    %c0_5 = arith.constant 0 : index
    %c0_6 = arith.constant 0 : index
    %17 = vector.load %arg4[%c0_4, %c0_5, %c0_6] : memref<1x4x33xf32, #tpu.memory_space<vmem>>, vector<1x4x33xf32>
    %18 = vector.shape_cast %16 : vector<4x33xf32> to vector<1x4x33xf32>
    %19 = arith.addf %17, %18 : vector<1x4x33xf32>
    %c0_7 = arith.constant 0 : index
    %c0_8 = arith.constant 0 : index
    %c0_9 = arith.constant 0 : index
    %20 = vector.load %arg4[%c0_7, %c0_8, %c0_9] : memref<1x4x33xf32, #tpu.memory_space<vmem>>, vector<1x4x33xf32>
    tpu.vector_store %arg4[%c0_7, %c0_8, %c0_9], %19 {strides = array<i32>} : memref<1x4x33xf32, #tpu.memory_space<vmem>>, vector<1x4x33xf32>,
    return
  }
  func.func @transform_0(%arg0: i32, %arg1: i32) -> (i32, i32) {
    %c1_i32 = arith.constant 1 : i32
    %0 = arith.muli %arg0, %c1_i32 : i32
    %1 = arith.addi %0, %arg1 : i32
    %c0_i32 = arith.constant 0 : i32
    %c0_i32_0 = arith.constant 0 : i32
    return %c0_i32, %1 : i32, i32
  }
  func.func @transform_1(%arg0: i32, %arg1: i32) -> (i32, i32) {
    %c1_i32 = arith.constant 1 : i32
    %0 = arith.muli %arg0, %c1_i32 : i32
    %1 = arith.addi %0, %arg1 : i32
    %c0_i32 = arith.constant 0 : i32
    %c0_i32_0 = arith.constant 0 : i32
    return %1, %c0_i32 : i32, i32
  }
  func.func @transform_2(%arg0: i32, %arg1: i32) -> (i32, i32, i32) {
    %c0_i32 = arith.constant 0 : i32
    %c0_i32_0 = arith.constant 0 : i32
    %c0_i32_1 = arith.constant 0 : i32
    return %arg0, %c0_i32, %c0_i32_0 : i32, i32, i32
  }
}

</mosaic_0001>

<llo_original>
// kernel: tpu_custom_call.1
$region0: #{tpu_custom_call.1}
  #allocation0 [shape = 'u32[]', space=smem, size = 0x4, offset = 0x4, fixed_abs, tag = 'smem constant byte address 0x4 - core index']
  #allocation1 [shape = 'u32[144,128]{1,0:T(1,128)}', space=vmem, size = 0x12000, scoped, tag = 'internal scratch']
  %s0 = inlined_call_operand.vmem [shape: s32[1,1024], index: 0, kind: input, shape index: {}]
  %s1 = inlined_call_operand.vmem [shape: f32[1024,33], index: 1, kind: input, shape index: {}]
  %s2 = inlined_call_operand.hbm [shape: f32[2,4,33], index: 2, kind: output, shape index: {}]
  %s3 = sld [smem:[#allocation0]]
  $region45: #{tpu_custom_call.1} parent=0
    _
  %s5 = ssub.s32 1, %s3
  %s6 = scalar_select 0, %s5, %s3
  $region1: #{tpu_custom_call.1} parent=0
    #allocation2 [shape = 'u8[4096]{0}', space=vmem, size = 0x1000, scoped, tag = 'output window, operand 0']
    #allocation3 [shape = 's32[2]{0}', space=sflag, size = 0x8, scoped, tag = 'scoped memory for tpu_custom_call.1']
    %7 = vsyncpa [#allocation3], 0
    %s8 = scalar_lea.sflag [#allocation3], 1
    %9 = vsyncpa %s8, 0
    loop: start=0, step=1, limit=4
    $region2: #{tpu_custom_call.1} parent=1 // loop_pre_header
      _
    $region3: #{tpu_custom_call.1} parent=1 // loop_header
      %s11 = sphi 0, %s15
      %p12 = scmp.ge.s32.totalorder %s11, 4
      %s18 = sphi 0, %s30
      %s19 = sphi 0, %s26
      %s20 = sphi 0, %s18
      %s21 = sphi 0, %s19
      %s22 = sphi 0, %s20
      %s23 = sphi 0, %s21
      %s35 = sphi 0, %s37
      %s38 = sphi 0, %s35
      %s39 = sphi 0, %s38
      %s55 = sphi 0, %s39
      %s63 = sphi 0, %s65
      %s66 = sphi 0, %s63
      %s67 = sphi 0, %s66
      %s83 = sphi 0, %s67
      %s89 = sphi 0, %s91
      %s92 = sphi 0, %s89
      %s93 = sphi 0, %s92
      %s109 = sphi 0, %s93
    $region4: #{tpu_custom_call.1} parent=1 // loop_header_branch
      %14 = sbr.rel (%p12) target = $region8
    $region5: #{tpu_custom_call.1} parent=1 // loop_body
      %s16 = ssub.s32 %s11, 1
      %s17 = ssub.s32 %s11, 2
      %s24 = sadd.s32 1, %s19
      %p25 = scmp.ge.s32.totalorder %s24, 1
      %s26 = scalar_select %p25, 0, %s24
      %s27 = sadd.s32 1, %s18
      %s28 = scalar_select %p25, %s27, %s18
      %p29 = scmp.ge.s32.totalorder %s28, 2
      %s30 = scalar_select %p29, 0, %s28
      %s31 = sadd.s32 %s18, %s19
      %s32 = sadd.s32 %s30, %s26
      %s33 = ssub.s32 %s31, %s32
      %p34 = scmp.eq.s32.totalorder %s33, 0
      %s36 = sadd.s32 %s35, 1
      %s37 = scalar_select %p34, %s35, %s36
      %p40 = pneg %p34
      %p41 = scmp.eq.s32.totalorder %s11, 1
      %p42 = por %p40, %p41
      %p43 = scmp.ne.s32.totalorder %s35, %s38
      %p44 = scmp.eq.s32.totalorder %s11, 0
      %p45 = por %p43, %p44
      %p46 = scmp.ne.s32.totalorder %s35, %s38
      %p47 = scmp.eq.s32.totalorder %s16, 1
      %p48 = por %p46, %p47
      %p49 = scmp.ne.s32.totalorder %s38, %s39
      %p50 = scmp.eq.s32.totalorder %s16, 0
      %p51 = por %p49, %p50
      %p52 = scmp.ne.s32.totalorder %s38, %s39
      %p53 = scmp.eq.s32.totalorder %s17, 1
      %p54 = por %p52, %p53
      %p56 = scmp.ne.s32.totalorder %s39, %s55
      %p57 = scmp.eq.s32.totalorder %s17, 0
      %p58 = por %p56, %p57
      %s59 = sadd.s32 %s18, %s19
      %s60 = sadd.s32 %s30, %s26
      %s61 = ssub.s32 %s59, %s60
      %p62 = scmp.eq.s32.totalorder %s61, 0
      %s64 = sadd.s32 %s63, 1
      %s65 = scalar_select %p62, %s63, %s64
      %p68 = pneg %p62
      %p69 = scmp.eq.s32.totalorder %s11, 1
      %p70 = por %p68, %p69
      %p71 = scmp.ne.s32.totalorder %s63, %s66
      %p72 = scmp.eq.s32.totalorder %s11, 0
      %p73 = por %p71, %p72
      %p74 = scmp.ne.s32.totalorder %s63, %s66
      %p75 = scmp.eq.s32.totalorder %s16, 1
      %p76 = por %p74, %p75
      %p77 = scmp.ne.s32.totalorder %s66, %s67
      %p78 = scmp.eq.s32.totalorder %s16, 0
      %p79 = por %p77, %p78
      %p80 = scmp.ne.s32.totalorder %s66, %s67
      %p81 = scmp.eq.s32.totalorder %s17, 1
      %p82 = por %p80, %p81
      %p84 = scmp.ne.s32.totalorder %s67, %s83
      %p85 = scmp.eq.s32.totalorder %s17, 0
      %p86 = por %p84, %p85
      %s87 = ssub.s32 %s18, %s30
      %p88 = scmp.eq.s32.totalorder %s87, 0
      %s90 = sadd.s32 %s89, 1
      %s91 = scalar_select %p88, %s89, %s90
      %p94 = pneg %p88
      %p95 = scmp.eq.s32.totalorder %s11, 1
      %p96 = por %p94, %p95
      %p97 = scmp.ne.s32.totalorder %s89, %s92
      %p98 = scmp.eq.s32.totalorder %s11, 0
      %p99 = por %p97, %p98
      %p100 = scmp.ne.s32.totalorder %s89, %s92
      %p101 = scmp.eq.s32.totalorder %s16, 1
      %p102 = por %p100, %p101
      %p103 = scmp.ne.s32.totalorder %s92, %s93
      %p104 = scmp.eq.s32.totalorder %s16, 0
      %p105 = por %p103, %p104
      %p106 = scmp.ne.s32.totalorder %s92, %s93
      %p107 = scmp.eq.s32.totalorder %s17, 1
      %p108 = por %p106, %p107
      %p110 = scmp.ne.s32.totalorder %s93, %s109
      %p111 = scmp.eq.s32.totalorder %s17, 0
      %p112 = por %p110, %p111
      %p113 = scmp.le.s32.totalorder 1, %s11
      %p114 = scmp.lt.s32.totalorder %s11, 3
      %p115 = pnand %p113, %p114
      %p116 = pneg %p115
      // Predicated region
      $region9: #{tpu_custom_call.1} parent=5 // pred_check
        _
      $region10: #{tpu_custom_call.1} parent=5 // pred_check_branch
        %118 = sbr.rel (%p115) target = $region12
      $region11: #{tpu_custom_call.1} parent=5 // pred_region
        %s119 = ssub.s32 %s11, 1
      $region12: #{tpu_custom_call.1} parent=5 // pred_fallthru
        _
      %p120 = scmp.lt.s32.totalorder %s11, 2
      // Predicated region
      $region13: #{tpu_custom_call.1} parent=5 // pred_check
        %p121 = pneg %p120
      $region14: #{tpu_custom_call.1} parent=5 // pred_check_branch
        %123 = sbr.rel (%p121) target = $region16
      $region15: #{tpu_custom_call.1} parent=5 // pred_region
        // Predicated region
        $region17: #{tpu_custom_call.1} parent=15 // pred_check
          %p124 = pneg %p45
        $region18: #{tpu_custom_call.1} parent=15 // pred_check_branch
          %126 = sbr.rel (%p124) target = $region20
        $region19: #{tpu_custom_call.1} parent=15 // pred_region
          %s127 = sadd.s32 %s18, %s19
          %s128 = smul.u32 4, %s127
          %p129 = scmp.lt.s32.totalorder %s128, 7
          %s130 = scalar_select %p129, %s128, 7
          %s131 = scalar_lea.vmem %s0, %s130
          %s132 = sadd.s32 %s18, %s19
          %s133 = smul.u32 4, %s132
        $region20: #{tpu_custom_call.1} parent=15 // pred_fallthru
          _
        // Predicated region
        $region21: #{tpu_custom_call.1} parent=15 // pred_check
          %p134 = pneg %p73
        $region22: #{tpu_custom_call.1} parent=15 // pred_check_branch
          %136 = sbr.rel (%p134) target = $region24
        $region23: #{tpu_custom_call.1} parent=15 // pred_region
          %s137 = sadd.s32 %s18, %s19
          %s138 = smul.u32 64, %s137
          %p139 = scmp.lt.s32.totalorder %s138, 127
          %s140 = scalar_select %p139, %s138, 127
          %s141 = smul.addr %s140, 8
          %s142 = scalar_lea.vmem %s1, %s141
          %s143 = sadd.s32 %s18, %s19
          %s144 = smul.u32 64, %s143
        $region24: #{tpu_custom_call.1} parent=15 // pred_fallthru
          _
      $region16: #{tpu_custom_call.1} parent=5 // pred_fallthru
        _
      %p145 = scmp.le.s32.totalorder 1, %s11
      %p146 = scmp.lt.s32.totalorder %s11, 3
      %p147 = pnand %p145, %p146
      %p148 = pneg %p147
      // Predicated region
      $region25: #{tpu_custom_call.1} parent=5 // pred_check
        _
      $region26: #{tpu_custom_call.1} parent=5 // pred_check_branch
        %150 = sbr.rel (%p147) target = $region28
      $region27: #{tpu_custom_call.1} parent=5 // pred_region
        %s151 = ssub.s32 %s11, 1
        %s152 = sadd.s32 %s20, %s21
        %s153 = smul.u32 4, %s152
        %p154 = scmp.lt.s32.totalorder %s153, 7
        %s155 = scalar_select %p154, %s153, 7
        %s156 = scalar_lea.vmem %s0, %s155
        %p157 = pneg %p51
        %p158 = pneg %p48
        %s159 = sadd.s32 %s20, %s21
        %s160 = smul.u32 64, %s159
        %p161 = scmp.lt.s32.totalorder %s160, 127
        %s162 = scalar_select %p161, %s160, 127
        %s163 = smul.addr %s162, 8
        %s164 = scalar_lea.vmem %s1, %s163
        %p165 = pneg %p79
        %p166 = pneg %p76
        %p167 = pneg %p105
        %p168 = pneg %p102
        %s169 = sand.u32 %s92, 1
        %s170 = scalar_lea.sflag [#allocation3], %s169
        %s171 = sand.u32 %s92, 1
        %s172 = smul.addr %s171, 4
        %s173 = scalar_lea.vmem [#allocation2], %s172
        %s174 = sadd.s32 %s20, %s21
        %s175 = smul.u32 4, %s174
        %p176 = scmp.lt.s32.totalorder %s175, 7
        %s177 = scalar_select %p176, %s175, 7
        %s178 = scalar_lea.vmem %s0, %s177
        %s179 = sadd.s32 %s20, %s21
        %s180 = smul.u32 4, %s179
        %s181 = sadd.s32 %s20, %s21
        %s182 = smul.u32 64, %s181
        %p183 = scmp.lt.s32.totalorder %s182, 127
        %s184 = scalar_select %p183, %s182, 127
        %s185 = smul.addr %s184, 8
        %s186 = scalar_lea.vmem %s1, %s185
        %s187 = sadd.s32 %s20, %s21
        %s188 = smul.u32 64, %s187
        %p189 = scmp.eq.s32.totalorder %s21, 0
        // Predicated region
        $region29: #{tpu_custom_call.1} parent=27 // pred_check
          %p190 = pneg %p189
        $region30: #{tpu_custom_call.1} parent=27 // pred_check_branch
          %192 = sbr.rel (%p190) target = $region32
        $region31: #{tpu_custom_call.1} parent=27 // pred_region
          %vm193 = vcmask 265216
          %194 = vst.msk [vmem:[%s173] sm:$0xf] %vm193, 0.0
        $region32: #{tpu_custom_call.1} parent=27 // pred_fallthru
          _
        %v195 = vld [vmem:[%s178] sm:$0xf]
        %v196 = vld [vmem:[%s186] sm:$0xff]
        %v197 = vld [vmem:[%s186 + $0x8] sm:$0xff]
        %v198 = vld [vmem:[%s186 + $0x10] sm:$0xff]
        %v199 = vld [vmem:[%s186 + $0x18] sm:$0xff]
        %v200 = vld [vmem:[%s186 + $0x20] sm:$0xff]
        %v201 = vld [vmem:[%s186 + $0x28] sm:$0xff]
        %v202 = vld [vmem:[%s186 + $0x30] sm:$0xff]
        %v203 = vld [vmem:[%s186 + $0x38] sm:$0xff]
        %v204 = vld [vmem:[%s186 + $0x40] sm:$0xff]
        %v205 = vld [vmem:[%s186 + $0x48] sm:$0xff]
        %v206 = vld [vmem:[%s186 + $0x50] sm:$0xff]
        %v207 = vld [vmem:[%s186 + $0x58] sm:$0xff]
        %v208 = vld [vmem:[%s186 + $0x60] sm:$0xff]
        %v209 = vld [vmem:[%s186 + $0x68] sm:$0xff]
        %v210 = vld [vmem:[%s186 + $0x70] sm:$0xff]
        %v211 = vld [vmem:[%s186 + $0x78] sm:$0xff]
        %v212 = vld [vmem:[%s186 + $0x80] sm:$0xff]
        %v213 = vld [vmem:[%s186 + $0x88] sm:$0xff]
        %v214 = vld [vmem:[%s186 + $0x90] sm:$0xff]
        %v215 = vld [vmem:[%s186 + $0x98] sm:$0xff]
        %v216 = vld [vmem:[%s186 + $0xa0] sm:$0xff]
        %v217 = vld [vmem:[%s186 + $0xa8] sm:$0xff]
        %v218 = vld [vmem:[%s186 + $0xb0] sm:$0xff]
        %v219 = vld [vmem:[%s186 + $0xb8] sm:$0xff]
        %v220 = vld [vmem:[%s186 + $0xc0] sm:$0xff]
        %v221 = vld [vmem:[%s186 + $0xc8] sm:$0xff]
        %v222 = vld [vmem:[%s186 + $0xd0] sm:$0xff]
        %v223 = vld [vmem:[%s186 + $0xd8] sm:$0xff]
        %v224 = vld [vmem:[%s186 + $0xe0] sm:$0xff]
        %v225 = vld [vmem:[%s186 + $0xe8] sm:$0xff]
        %v226 = vld [vmem:[%s186 + $0xf0] sm:$0xff]
        %v227 = vld [vmem:[%s186 + $0xf8] sm:$0xff]
        %v228 = vld [vmem:[%s186 + $0x100] sm:$0xff]
        %v229 = vld [vmem:[%s186 + $0x108] sm:$0xff]
        %v230 = vld [vmem:[%s186 + $0x110] sm:$0xff]
        %v231 = vld [vmem:[%s186 + $0x118] sm:$0xff]
        %v232 = vld [vmem:[%s186 + $0x120] sm:$0xff]
        %v233 = vld [vmem:[%s186 + $0x128] sm:$0xff]
        %v234 = vld [vmem:[%s186 + $0x130] sm:$0xff]
        %v235 = vld [vmem:[%s186 + $0x138] sm:$0xff]
        %v236 = vld [vmem:[%s186 + $0x140] sm:$0xff]
        %v237 = vld [vmem:[%s186 + $0x148] sm:$0xff]
        %v238 = vld [vmem:[%s186 + $0x150] sm:$0xff]
        %v239 = vld [vmem:[%s186 + $0x158] sm:$0xff]
        %v240 = vld [vmem:[%s186 + $0x160] sm:$0xff]
        %v241 = vld [vmem:[%s186 + $0x168] sm:$0xff]
        %v242 = vld [vmem:[%s186 + $0x170] sm:$0xff]
        %v243 = vld [vmem:[%s186 + $0x178] sm:$0xff]
        %v244 = vld [vmem:[%s186 + $0x180] sm:$0xff]
        %v245 = vld [vmem:[%s186 + $0x188] sm:$0xff]
        %v246 = vld [vmem:[%s186 + $0x190] sm:$0xff]
        %v247 = vld [vmem:[%s186 + $0x198] sm:$0xff]
        %v248 = vld [vmem:[%s186 + $0x1a0] sm:$0xff]
        %v249 = vld [vmem:[%s186 + $0x1a8] sm:$0xff]
        %v250 = vld [vmem:[%s186 + $0x1b0] sm:$0xff]
        %v251 = vld [vmem:[%s186 + $0x1b8] sm:$0xff]
        %v252 = vld [vmem:[%s186 + $0x1c0] sm:$0xff]
        %v253 = vld [vmem:[%s186 + $0x1c8] sm:$0xff]
        %v254 = vld [vmem:[%s186 + $0x1d0] sm:$0xff]
        %v255 = vld [vmem:[%s186 + $0x1d8] sm:$0xff]
        %v256 = vld [vmem:[%s186 + $0x1e0] sm:$0xff]
        %v257 = vld [vmem:[%s186 + $0x1e8] sm:$0xff]
        %v258 = vld [vmem:[%s186 + $0x1f0] sm:$0xff]
        %v259 = vld [vmem:[%s186 + $0x1f8] sm:$0xff]
        %v260 = vlaneseq
        %v261 = vshrl.u32 %v260, 7
        %v262 = vlaneseq
        %v263 = vshrl.u32 %v262, 7
        %v264 = vsub.s32 0, %v263
        %v265 = vrot.slane %v195, %v264
        %v266 = vlaneseq
        %v267 = vshrl.u32 %v266, 7
        %v268 = vsub.s32 1, %v267
        %v269 = vrot.slane %v195, %v268
        %v270 = vlaneseq
        %v271 = vshrl.u32 %v270, 7
        %v272 = vsub.s32 2, %v271
        %v273 = vrot.slane %v195, %v272
        %v274 = vlaneseq
        %v275 = vshrl.u32 %v274, 7
        %v276 = vsub.s32 3, %v275
        %v277 = vrot.slane %v195, %v276
        %vm278 = vcmp.eq.s32.totalorder %v261, %v265
        %vm279 = vcmp.eq.s32.totalorder %v261, %v269
        %vm280 = vcmp.eq.s32.totalorder %v261, %v273
        %vm281 = vcmp.eq.s32.totalorder %v261, %v277
        %v282 = vsel %vm278, 1, 0
        %v283 = vsel %vm279, 1, 0
        %v284 = vsel %vm280, 1, 0
        %v285 = vsel %vm281, 1, 0
        %v286 = vcvt.s32.f32 %v282
        %v287 = vcvt.s32.f32 %v283
        %v288 = vcvt.s32.f32 %v284
        %v289 = vcvt.s32.f32 %v285
        %290 = vmatprep.subr.mxu0 0.0
        %291 = vmatpush1.msra.mxu0 %v196
        %292 = vmatprep.subr.mxu0 0.0
        %293 = vmatpush1.msra.mxu0 %v197
        %294 = vmatprep.subr.mxu0 0.0
        %295 = vmatpush1.msra.mxu0 %v198
        %296 = vmatprep.subr.mxu0 0.0
        %297 = vmatpush1.msra.mxu0 %v199
        %298 = vmatprep.subr.mxu0 0.0
        %299 = vmatpush1.msra.mxu0 %v200
        %300 = vmatprep.subr.mxu0 0.0
        %301 = vmatpush1.msra.mxu0 %v201
        %302 = vmatprep.subr.mxu0 0.0
        %303 = vmatpush1.msra.mxu0 %v202
        %304 = vmatprep.subr.mxu0 0.0
        %305 = vmatpush1.msra.mxu0 %v203
        %306 = vmatprep.subr.mxu0 0.0
        %307 = vmatpush1.msra.mxu0 %v204
        %308 = vmatprep.subr.mxu0 0.0
        %309 = vmatpush1.msra.mxu0 %v205
        %310 = vmatprep.subr.mxu0 0.0
        %311 = vmatpush1.msra.mxu0 %v206
        %312 = vmatprep.subr.mxu0 0.0
        %313 = vmatpush1.msra.mxu0 %v207
        %314 = vmatprep.subr.mxu0 0.0
        %315 = vmatpush1.msra.mxu0 %v208
        %316 = vmatprep.subr.mxu0 0.0
        %317 = vmatpush1.msra.mxu0 %v209
        %318 = vmatprep.subr.mxu0 0.0
        %319 = vmatpush1.msra.mxu0 %v210
        %320 = vmatprep.subr.mxu0 0.0
        %321 = vmatpush1.msra.mxu0 %v211
        %322 = vmatprep.subr.mxu0 0.0
        %323 = vmatpush1.msra.mxu0 %v212
        %324 = vmatprep.subr.mxu0 0.0
        %325 = vmatpush1.msra.mxu0 %v213
        %326 = vmatprep.subr.mxu0 0.0
        %327 = vmatpush1.msra.mxu0 %v214
        %328 = vmatprep.subr.mxu0 0.0
        %329 = vmatpush1.msra.mxu0 %v215
        %330 = vmatprep.subr.mxu0 0.0
        %331 = vmatpush1.msra.mxu0 %v216
        %332 = vmatprep.subr.mxu0 0.0
        %333 = vmatpush1.msra.mxu0 %v217
        %334 = vmatprep.subr.mxu0 0.0
        %335 = vmatpush1.msra.mxu0 %v218
        %336 = vmatprep.subr.mxu0 0.0
        %337 = vmatpush1.msra.mxu0 %v219
        %338 = vmatprep.subr.mxu0 0.0
        %339 = vmatpush1.msra.mxu0 %v220
        %340 = vmatprep.subr.mxu0 0.0
        %341 = vmatpush1.msra.mxu0 %v221
        %342 = vmatprep.subr.mxu0 0.0
        %343 = vmatpush1.msra.mxu0 %v222
        %344 = vmatprep.subr.mxu0 0.0
        %345 = vmatpush1.msra.mxu0 %v223
        %346 = vmatprep.subr.mxu0 0.0
        %347 = vmatpush1.msra.mxu0 %v224
        %348 = vmatprep.subr.mxu0 0.0
        %349 = vmatpush1.msra.mxu0 %v225
        %350 = vmatprep.subr.mxu0 0.0
        %351 = vmatpush1.msra.mxu0 %v226
        %352 = vmatprep.subr.mxu0 0.0
        %353 = vmatpush1.msra.mxu0 %v227
        %354 = vmatprep.mubr.f32.mxu0 %v287
        %355 = vmatmul.mubr.f32.gmra.mrb[0].mxu0 %v286
        %v356 = vpop.f32.mrb[0].mxu0
        %v357 = vadd.f32 0.0, %v356
        %v358 = vpop.f32.mrb[0].mxu0
        %359 = vdwg.mxu0
        %360 = vmatprep.subr.mxu0 0.0
        %361 = vmatpush1.msra.mxu0 %v228
        %362 = vmatprep.subr.mxu0 0.0
        %363 = vmatpush1.msra.mxu0 %v229
        %364 = vmatprep.subr.mxu0 0.0
        %365 = vmatpush1.msra.mxu0 %v230
        %366 = vmatprep.subr.mxu0 0.0
        %367 = vmatpush1.msra.mxu0 %v231
        %368 = vmatprep.subr.mxu0 0.0
        %369 = vmatpush1.msra.mxu0 %v232
        %370 = vmatprep.subr.mxu0 0.0
        %371 = vmatpush1.msra.mxu0 %v233
        %372 = vmatprep.subr.mxu0 0.0
        %373 = vmatpush1.msra.mxu0 %v234
        %374 = vmatprep.subr.mxu0 0.0
        %375 = vmatpush1.msra.mxu0 %v235
        %376 = vmatprep.subr.mxu0 0.0
        %377 = vmatpush1.msra.mxu0 %v236
        %378 = vmatprep.subr.mxu0 0.0
        %379 = vmatpush1.msra.mxu0 %v237
        %380 = vmatprep.subr.mxu0 0.0
        %381 = vmatpush1.msra.mxu0 %v238
        %382 = vmatprep.subr.mxu0 0.0
        %383 = vmatpush1.msra.mxu0 %v239
        %384 = vmatprep.subr.mxu0 0.0
        %385 = vmatpush1.msra.mxu0 %v240
        %386 = vmatprep.subr.mxu0 0.0
        %387 = vmatpush1.msra.mxu0 %v241
        %388 = vmatprep.subr.mxu0 0.0
        %389 = vmatpush1.msra.mxu0 %v242
        %390 = vmatprep.subr.mxu0 0.0
        %391 = vmatpush1.msra.mxu0 %v243
        %392 = vmatprep.subr.mxu0 0.0
        %393 = vmatpush1.msra.mxu0 %v244
        %394 = vmatprep.subr.mxu0 0.0
        %395 = vmatpush1.msra.mxu0 %v245
        %396 = vmatprep.subr.mxu0 0.0
        %397 = vmatpush1.msra.mxu0 %v246
        %398 = vmatprep.subr.mxu0 0.0
        %399 = vmatpush1.msra.mxu0 %v247
        %400 = vmatprep.subr.mxu0 0.0
        %401 = vmatpush1.msra.mxu0 %v248
        %402 = vmatprep.subr.mxu0 0.0
        %403 = vmatpush1.msra.mxu0 %v249
        %404 = vmatprep.subr.mxu0 0.0
        %405 = vmatpush1.msra.mxu0 %v250
        %406 = vmatprep.subr.mxu0 0.0
        %407 = vmatpush1.msra.mxu0 %v251
        %408 = vmatprep.subr.mxu0 0.0
        %409 = vmatpush1.msra.mxu0 %v252
        %410 = vmatprep.subr.mxu0 0.0
        %411 = vmatpush1.msra.mxu0 %v253
        %412 = vmatprep.subr.mxu0 0.0
        %413 = vmatpush1.msra.mxu0 %v254
        %414 = vmatprep.subr.mxu0 0.0
        %415 = vmatpush1.msra.mxu0 %v255
        %416 = vmatprep.subr.mxu0 0.0
        %417 = vmatpush1.msra.mxu0 %v256
        %418 = vmatprep.subr.mxu0 0.0
        %419 = vmatpush1.msra.mxu0 %v257
        %420 = vmatprep.subr.mxu0 0.0
        %421 = vmatpush1.msra.mxu0 %v258
        %422 = vmatprep.subr.mxu0 0.0
        %423 = vmatpush1.msra.mxu0 %v259
        %424 = vmatprep.mubr.f32.mxu0 %v289
        %425 = vmatmul.mubr.f32.gmra.mrb[0].mxu0 %v288
        %v426 = vpop.f32.mrb[0].mxu0
        %v427 = vadd.f32 %v357, %v426
        %v428 = vpop.f32.mrb[0].mxu0
        %429 = vdwg.mxu0
        %v430 = vld [vmem:[%s173] sm:$0xf]
        %v431 = vadd.f32 %v430, %v427
        %vm432 = vcmask 265216
        %433 = vst.msk [vmem:[%s173] sm:$0xf] %vm432, %v431
        %s434 = sand.u32 %s92, 1
        %s435 = scalar_lea.sflag [#allocation3], %s434
        %s436 = sand.u32 %s92, 1
        %s437 = smul.addr %s436, 4
        %s438 = scalar_lea.vmem [#allocation2], %s437
        // Predicated region
        $region33: #{tpu_custom_call.1} parent=27 // pred_check
          %p439 = pneg %p102
        $region34: #{tpu_custom_call.1} parent=27 // pred_check_branch
          %441 = sbr.rel (%p439) target = $region36
        $region35: #{tpu_custom_call.1} parent=27 // pred_region
          %s443 = ssub.s32 64, 64
          %444 = vsyncadd %s435, %s443
          %s445 = smul.addr %s20, 64
          %s446 = scalar_lea.hbm %s2, %s445
          %s448 = sshll.u32 %s438, 4
          %s449 = int_to_ptr.vmem [resolvable:$true] %s448
          %451 = dma.vmem_to_hbm [thread:$0]  %s449, 64, %s446, %s435
        $region36: #{tpu_custom_call.1} parent=27 // pred_fallthru
          _
      $region28: #{tpu_custom_call.1} parent=5 // pred_fallthru
        _
      %p452 = scmp.le.s32.totalorder 2, %s11
      // Predicated region
      $region37: #{tpu_custom_call.1} parent=5 // pred_check
        %p453 = pneg %p452
      $region38: #{tpu_custom_call.1} parent=5 // pred_check_branch
        %455 = sbr.rel (%p453) target = $region40
      $region39: #{tpu_custom_call.1} parent=5 // pred_region
        %s456 = ssub.s32 %s11, 2
        // Predicated region
        $region41: #{tpu_custom_call.1} parent=39 // pred_check
          %p457 = pneg %p108
        $region42: #{tpu_custom_call.1} parent=39 // pred_check_branch
          %459 = sbr.rel (%p457) target = $region44
        $region43: #{tpu_custom_call.1} parent=39 // pred_region
          %s460 = sand.u32 %s93, 1
          %s461 = scalar_lea.sflag [#allocation3], %s460
          %s462 = sand.u32 %s93, 1
          %s463 = smul.addr %s462, 4
          %s464 = scalar_lea.vmem [#allocation2], %s463
          %465 = dma.done %s461, 64
        $region44: #{tpu_custom_call.1} parent=39 // pred_fallthru
          _
      $region40: #{tpu_custom_call.1} parent=5 // pred_fallthru
        _
    $region6: #{tpu_custom_call.1} parent=1 // loop_footer
      %s15 = sadd.s32 1, %s11
    $region7: #{tpu_custom_call.1} parent=1 // loop_footer_branch
      %10 = sbr.rel target = $region3
    $region8: #{tpu_custom_call.1} parent=1 // loop_exit
      _
    %466 = vsyncpa [#allocation3], 1
    %s467 = scalar_lea.sflag [#allocation3], 1
    %468 = vsyncpa %s467, 1

</llo_original>
